<compile_context>
chip_gen: v6e
topology: v6e:2x2x1
jax: 0.10.0
libtpu: 0.0.40
codegen_flags: <defaults>
</compile_context>

<pallas_src>
import functools

import jax
import jax.numpy as jnp
from jax.experimental import pallas as pl
from jax.experimental.pallas import tpu as pltpu

LANE = 128
SUBLANE = 8


def _cdiv(a, b):
    return (a + b - 1) // b


def _round_up(x, m):
    return _cdiv(x, m) * m


def _pad2d(a, rows, cols):
    r, c = a.shape
    if r == rows and c == cols:
        return a
    return jnp.pad(a, ((0, rows - r), (0, cols - c)))


def _vmem_budget_and_max_tile():
    """Per-generation VMEM budget + max M-tile (128 MiB v5e/v6e vs 64 MiB v7x)."""
    try:
        cap = pltpu.get_tpu_info().vmem_capacity_bytes
    except Exception:
        cap = 64 * 1024 * 1024            # conservative fallback (v7x-safe)
    if cap >= 100 * 1024 * 1024:          # v5e / v6e: 128 MiB VMEM
        return 96 * 1024 * 1024, 1024
    return 48 * 1024 * 1024, 512          # v7x: 64 MiB per TensorCore


def _choose_tile_m(M, tile_m_max, tile_bytes, vmem_budget, min_steps=2):
    """Balanced, padding-aware M-tile selection.

    tm ~= ceil(M / n_steps) rounded up to the sublane (8), so Mp = round_up(M, tm)
    never balloons; keeps >= min_steps grid steps (v7x megacore sharding) and
    shrinks until the double-buffered working set fits the VMEM budget.
    """
    M8 = _round_up(max(M, 1), SUBLANE)
    n = _cdiv(M8, min(tile_m_max, M8))
    if M8 >= min_steps * SUBLANE:
        n = max(n, min_steps)     # >=2 grid steps so v7x's 2nd TC is not idle
    while True:
        tm = _round_up(_cdiv(M8, n), SUBLANE)
        if tm <= SUBLANE or tile_bytes(tm) <= vmem_budget:
            return tm
        n += 1


# ----------------------------- Pallas kernels ------------------------------ #

def _matmul_bias_kernel(p_ref, w_ref, b_ref, o_ref, *, relu_out):
    acc = jnp.dot(p_ref[...], w_ref[...], preferred_element_type=jnp.float32)
    acc = acc + b_ref[...]
    if relu_out:
        acc = jnp.maximum(acc, 0.0)   # next stage's input ReLU, fused in f32
    o_ref[...] = acc.astype(o_ref.dtype)


def _matmul_bias_res_kernel(p_ref, w_ref, b_ref, r_ref, o_ref, *, relu_out):
    acc = jnp.dot(p_ref[...], w_ref[...], preferred_element_type=jnp.float32)
    acc = acc + b_ref[...] + r_ref[...].astype(jnp.float32)  # bf16 residual, f32 add
    if relu_out:
        acc = jnp.maximum(acc, 0.0)
    o_ref[...] = acc.astype(o_ref.dtype)


def fused_matmul_bias(p, w, bias, residual=None, *, relu_out=False,
                      out_dtype=jnp.bfloat16):
    """out = p @ w + bias (+ residual) [+ epilogue ReLU], row-tiled Pallas grid.

    p: (M, K) bf16 patches (any input ReLU already applied upstream);
    w: (K, Cout) weights with BN scale folded in; bias: (Cout,) f32;
    residual: optional (M, Cout) bf16. Matmul operands run in bf16 on the MXU
    with f32 accumulation; epilogue in f32; output cast to out_dtype.
    """
    M, K = p.shape
    Cout = w.shape[1]
    Kp = _round_up(K, LANE)       # lane-dense contraction dim
    Cp = _round_up(Cout, LANE)    # lane-dense output dim (unmasked stores)
    has_res = residual is not None
    out_bytes = jnp.dtype(out_dtype).itemsize

    vmem_budget, tile_m_max = _vmem_budget_and_max_tile()

    def tile_bytes(t):
        # Streamed tiles are double-buffered: patches (bf16), residual (bf16),
        # output (out_dtype). Weight/bias blocks have constant index maps (the
        # pipeline fetches them once) but still occupy two buffers each.
        stream = t * Kp * 2 + (t * Cp * 2 if has_res else 0) + t * Cp * out_bytes
        resident = Kp * Cp * 2 + Cp * 4
        return 2 * stream + 2 * resident

    tm = _choose_tile_m(M, tile_m_max, tile_bytes, vmem_budget)
    Mp = _round_up(M, tm)
    grid = (Mp // tm,)

    pb = _pad2d(p.astype(jnp.bfloat16), Mp, Kp)
    wb = _pad2d(w.astype(jnp.bfloat16), Kp, Cp)
    bb = _pad2d(bias.reshape(1, -1).astype(jnp.float32), 1, Cp)

    in_specs = [
        pl.BlockSpec((tm, Kp), lambda i: (i, 0)),   # streamed patch tiles
        pl.BlockSpec((Kp, Cp), lambda i: (0, 0)),   # weight: index-constant
        pl.BlockSpec((1, Cp), lambda i: (0, 0)),    # bias: index-constant
    ]
    args = [pb, wb, bb]
    # True (unpadded) work for the advisory cost estimate.
    bytes_accessed = M * K * 2 + K * Cout * 2 + Cout * 4 + M * Cout * out_bytes

    if has_res:
        rb = _pad2d(residual.astype(jnp.bfloat16), Mp, Cp)
        in_specs.append(pl.BlockSpec((tm, Cp), lambda i: (i, 0)))
        args.append(rb)
        bytes_accessed += M * Cout * 2
        kernel = functools.partial(_matmul_bias_res_kernel, relu_out=relu_out)
    else:
        kernel = functools.partial(_matmul_bias_kernel, relu_out=relu_out)

    out = pl.pallas_call(
        kernel,
        out_shape=jax.ShapeDtypeStruct((Mp, Cp), out_dtype),
        grid=grid,
        in_specs=in_specs,
        out_specs=pl.BlockSpec((tm, Cp), lambda i: (i, 0)),
        compiler_params=pltpu.CompilerParams(
            dimension_semantics=("parallel",),
            vmem_limit_bytes=vmem_budget,
        ),
        cost_estimate=pl.CostEstimate(
            flops=2 * M * K * Cout,
            transcendentals=0,
            bytes_accessed=int(bytes_accessed),
        ),
    )(*args)
    return out[:M, :Cout]


# ------------------------------- glue helpers ------------------------------ #

def fold_bn(gamma, beta, rm, rv, eps=1e-5):
    s = gamma / jnp.sqrt(rv + eps)
    b = beta - rm * s
    return s, b


def conv_w_to_mat(w):
    """(Cout, Cin, kh, kw) -> (kh*kw*Cin, Cout), matching im2col patch order."""
    co = w.shape[0]
    return jnp.transpose(w, (2, 3, 1, 0)).reshape(-1, co)


def im2col3x3(x, stride):
    """x: (N, H, W, C) NHWC (bf16), pad=1 -> patches (N*Hout*Wout, 9*C)."""
    # TODO(synk): fuse this 9-tap gather into the Pallas kernel (tap grid axis /
    # shifted in-kernel window reads) to remove the 9x patch materialization in
    # HBM, which dominates traffic at large activation sizes.
    N, H, W, C = x.shape
    xp = jnp.pad(x, ((0, 0), (1, 1), (1, 1), (0, 0)))
    Hout = (H + 2 - 3) // stride + 1
    Wout = (W + 2 - 3) // stride + 1
    pats = []
    for ky in range(3):
        for kx in range(3):
            pats.append(xp[:, ky:ky + stride * (Hout - 1) + 1:stride,
                            kx:kx + stride * (Wout - 1) + 1:stride, :])
    p = jnp.concatenate(pats, axis=-1)
    return p.reshape(N * Hout * Wout, 9 * C), (N, Hout, Wout)


# ------------------------- ResNetBasicblock forward ------------------------ #

def resnet_basicblock_forward(x_nchw, params, stride):
    x = jnp.transpose(x_nchw, (0, 2, 3, 1)).astype(jnp.float32)  # NCHW -> NHWC
    N, H, W, Cin = x.shape
    Cout = params['conv_a']['w'].shape[0]

    # Input ReLU (shared by conv_a and the ReLUConvBN downsample) is applied
    # once, in f32, BEFORE the bf16 cast + im2col.
    x_bf = x.astype(jnp.bfloat16)                        # raw (residual / pool)
    relu_x_bf = jnp.maximum(x, 0.0).astype(jnp.bfloat16)

    # conv_a: ReLU -> Conv3x3(stride, pad=1) -> BN; conv_b's input ReLU is fused
    # into this kernel's epilogue (relu_out=True); output stored in bf16.
    p_a, (_, Ha, Wa) = im2col3x3(relu_x_bf, stride)
    sa, ba = fold_bn(**params['conv_a']['bn'])
    wa = conv_w_to_mat(params['conv_a']['w']) * sa[None, :]
    ya = fused_matmul_bias(p_a, wa, ba, relu_out=True, out_dtype=jnp.bfloat16)
    ya = ya.reshape(N, Ha, Wa, Cout)

    # residual branch (bf16 end-to-end; upcast inside the final kernel epilogue)
    down = params['down']
    if down is None:
        residual_flat = x_bf.reshape(N * Ha * Wa, Cout)
    elif down['type'] == 'avg_conv':
        # AvgPool2d(2,2) as 4 strided bf16 adds (XLA-fused), then 1x1 matmul.
        pooled = 0.25 * (x_bf[:, 0::2, 0::2, :] + x_bf[:, 0::2, 1::2, :]
                         + x_bf[:, 1::2, 0::2, :] + x_bf[:, 1::2, 1::2, :])
        p_r = pooled.astype(jnp.bfloat16).reshape(N * Ha * Wa, Cin)
        w1 = conv_w_to_mat(down['w'])                    # (Cin, Cout)
        residual_flat = fused_matmul_bias(
            p_r, w1, jnp.zeros((Cout,), jnp.float32),
            relu_out=False, out_dtype=jnp.bfloat16)
    else:  # ReLUConvBN 1x1 (stride 1, pad 0)
        p_r = relu_x_bf.reshape(N * H * W, Cin)
        sr, br = fold_bn(**down['bn'])
        wr = conv_w_to_mat(down['w']) * sr[None, :]
        residual_flat = fused_matmul_bias(p_r, wr, br,
                                          relu_out=False, out_dtype=jnp.bfloat16)

    # conv_b: (input ReLU already applied by conv_a's epilogue) Conv3x3(1, pad=1)
    # -> BN, residual add fused in-kernel; final output stays f32.
    p_b, _ = im2col3x3(ya, 1)
    sb, bb = fold_bn(**params['conv_b']['bn'])
    wb = conv_w_to_mat(params['conv_b']['w']) * sb[None, :]
    out_flat = fused_matmul_bias(p_b, wb, bb, residual=residual_flat,
                                 relu_out=False, out_dtype=jnp.float32)
    out = out_flat.reshape(N, Ha, Wa, Cout)
    return jnp.transpose(out, (0, 3, 1, 2))  # NHWC -> NCHW


# -------------------------- deterministic params --------------------------- #

def init_params(key, c_in, c_out, stride):
    ks = jax.random.split(key, 8)

    def conv(k, co, ci, kh, kw):
        return 0.1 * jax.random.normal(k, (co, ci, kh, kw), jnp.float32)

    def bn(k, c):
        k1, k2, k3, k4 = jax.random.split(k, 4)
        return dict(gamma=1.0 + 0.1 * jax.random.normal(k1, (c,), jnp.float32),
                    beta=0.1 * jax.random.normal(k2, (c,), jnp.float32),
                    rm=0.1 * jax.random.normal(k3, (c,), jnp.float32),
                    rv=0.5 + jnp.abs(jax.random.normal(k4, (c,), jnp.float32)))

    params = {
        'conv_a': dict(w=conv(ks[0], c_out, c_in, 3, 3), bn=bn(ks[1], c_out)),
        'conv_b': dict(w=conv(ks[2], c_out, c_out, 3, 3), bn=bn(ks[3], c_out)),
    }
    if stride == 2:
        params['down'] = dict(type='avg_conv', w=conv(ks[4], c_out, c_in, 1, 1))
    elif c_in != c_out:
        params['down'] = dict(type='rcb', w=conv(ks[4], c_out, c_in, 1, 1),
                              bn=bn(ks[5], c_out))
    else:
        params['down'] = None
    return params


# ------------------------------ JAX reference ------------------------------ #

def ref_forward(x, params, stride, eps=1e-5):
    def rcb(y, w, bn, s, pad):
        y = jnp.maximum(y, 0.0)
        y = jax.lax.conv_general_dilated(
            y, w, (s, s), [(pad, pad), (pad, pad)],
            dimension_numbers=('NCHW', 'OIHW', 'NCHW'))
        sc = bn['gamma'] / jnp.sqrt(bn['rv'] + eps)
        return (y * sc[None, :, None, None]
                + (bn['beta'] - bn['rm'] * sc)[None, :, None, None])

    ya = rcb(x, params['conv_a']['w'], params['conv_a']['bn'], stride, 1)
    yb = rcb(ya, params['conv_b']['w'], params['conv_b']['bn'], 1, 1)
    down = params['down']
    if down is None:
        res = x
    elif down['type'] == 'avg_conv':
        N, C, H, W = x.shape
        pooled = x.reshape(N, C, H // 2, 2, W // 2, 2).mean(axis=(3, 5))
        res = jax.lax.conv_general_dilated(
            pooled, down['w'], (1, 1), [(0, 0), (0, 0)],
            dimension_numbers=('NCHW', 'OIHW', 'NCHW'))
    else:
        res = rcb(x, down['w'], down['bn'], 1, 0)
    return res + yb


# ---------------------------------- main ----------------------------------- #

if __name__ == "__main__":
    key = jax.random.PRNGKey(0)
    kx, kp1, kp2, kp3 = jax.random.split(key, 4)
    x = jax.random.normal(kx, (2, 4, 16, 16), jnp.float32)  # NCHW, like PyTorch

    # (inplanes, planes, stride): exercise all three downsample variants.
    configs = [(4, 8, 2), (4, 8, 1), (4, 4, 1)]
    for (ci, co, st), kp in zip(configs, [kp1, kp2, kp3]):
        params = init_params(kp, ci, co, st)
        out = resnet_basicblock_forward(x, params, st)
        out = jax.block_until_ready(out)
        ref = ref_forward(x, params, st)
        assert out.shape == ref.shape, (out.shape, ref.shape)
        err = float(jnp.max(jnp.abs(out - ref)))
        # bf16 matmul operands + bf16 intermediates/residual (f32 accumulate,
        # f32 reference) -> loosened tolerance.
        assert jnp.allclose(out, ref, atol=8e-2, rtol=8e-2), \
            f"mismatch for config {(ci, co, st)}: max abs err {err}"

    print("KERNEL_OK")
</pallas_src>

<mosaic_0001>
module attributes {stable_mosaic.version = 11 : i64} {
  func.func @_matmul_bias_kernel(%arg0: i32, %arg1: memref<64x128xbf16, #tpu.memory_space<vmem>>, %arg2: memref<128x128xbf16, #tpu.memory_space<vmem>>, %arg3: memref<1x128xf32, #tpu.memory_space<vmem>>, %arg4: memref<64x128xbf16, #tpu.memory_space<vmem>>) attributes {dimension_semantics = [#tpu.dimension_semantics<parallel>], iteration_bounds = array<i64: 2>, scalar_prefetch = 0 : i64, scratch_operands = 0 : i64, tpu.core_type = #tpu.core_type<tc>, window_params = [{transform_indices = @transform_0, window_bounds = array<i64: 64, 128>}, {pipeline_mode = #tpu.pipeline_mode<synchronous>, transform_indices = @transform_1, window_bounds = array<i64: 128, 128>}, {pipeline_mode = #tpu.pipeline_mode<synchronous>, transform_indices = @transform_2, window_bounds = array<i64: 1, 128>}, {transform_indices = @transform_3, window_bounds = array<i64: 64, 128>}]} {
    %c0 = arith.constant 0 : index
    %c0_0 = arith.constant 0 : index
    %0 = vector.load %arg1[%c0, %c0_0] : memref<64x128xbf16, #tpu.memory_space<vmem>>, vector<64x128xbf16>
    %c0_1 = arith.constant 0 : index
    %c0_2 = arith.constant 0 : index
    %1 = vector.load %arg2[%c0_1, %c0_2] : memref<128x128xbf16, #tpu.memory_space<vmem>>, vector<128x128xbf16>
    %cst = arith.constant dense<0.000000e+00> : vector<64x128xf32>
    %2 = tpu.matmul %0, %1, %cst {dimension_numbers = #tpu.dot_dimension_numbers<[1], [0], [0], [1], [0, 0, 1, 1], [], []>} : vector<64x128xbf16>, vector<128x128xbf16>, vector<64x128xf32> -> vector<64x128xf32>
    %c0_3 = arith.constant 0 : index
    %c0_4 = arith.constant 0 : index
    %3 = vector.load %arg3[%c0_3, %c0_4] : memref<1x128xf32, #tpu.memory_space<vmem>>, vector<1x128xf32>
    %4 = vector.broadcast %3 : vector<1x128xf32> to vector<64x128xf32>
    %5 = arith.addf %2, %4 : vector<64x128xf32>
    %cst_5 = arith.constant 0.000000e+00 : f32
    %6 = vector.broadcast %cst_5 : f32 to vector<64x128xf32>
    %7 = arith.maximumf %5, %6 : vector<64x128xf32>
    %8 = arith.truncf %7 : vector<64x128xf32> to vector<64x128xbf16>
    %c0_6 = arith.constant 0 : index
    %c0_7 = arith.constant 0 : index
    %9 = vector.load %arg4[%c0_6, %c0_7] : memref<64x128xbf16, #tpu.memory_space<vmem>>, vector<64x128xbf16>
    tpu.vector_store %arg4[%c0_6, %c0_7], %8 {strides = array<i32>} : memref<64x128xbf16, #tpu.memory_space<vmem>>, vector<64x128xbf16>,
    return
  }
  func.func @transform_0(%arg0: i32) -> (i32, i32) {
    %c0_i32 = arith.constant 0 : i32
    %c0_i32_0 = arith.constant 0 : i32
    return %arg0, %c0_i32 : i32, i32
  }
  func.func @transform_1(%arg0: i32) -> (i32, i32) {
    %c0_i32 = arith.constant 0 : i32
    %c0_i32_0 = arith.constant 0 : i32
    %c0_i32_1 = arith.constant 0 : i32
    return %c0_i32, %c0_i32_0 : i32, i32
  }
  func.func @transform_2(%arg0: i32) -> (i32, i32) {
    %c0_i32 = arith.constant 0 : i32
    %c0_i32_0 = arith.constant 0 : i32
    %c0_i32_1 = arith.constant 0 : i32
    return %c0_i32, %c0_i32_0 : i32, i32
  }
  func.func @transform_3(%arg0: i32) -> (i32, i32) {
    %c0_i32 = arith.constant 0 : i32
    %c0_i32_0 = arith.constant 0 : i32
    return %arg0, %c0_i32 : i32, i32
  }
}

</mosaic_0001>

<llo_original>
// kernel: tpu_custom_call.1
$region0: #{tpu_custom_call.1}
  #allocation0 [shape = 'u32[]', space=smem, size = 0x4, offset = 0x4, fixed_abs, tag = 'smem constant byte address 0x4 - core index']
  #allocation1 [shape = 'u32[144,128]{1,0:T(1,128)}', space=vmem, size = 0x12000, scoped, tag = 'internal scratch']
  %s0 = inlined_call_operand.hbm [shape: bf16[128,128], index: 0, kind: input, shape index: {}]
  %s1 = inlined_call_operand.hbm [shape: bf16[128,128], index: 1, kind: input, shape index: {}]
  %s2 = inlined_call_operand.vmem [shape: f32[1,128], index: 2, kind: input, shape index: {}]
  %s3 = inlined_call_operand.hbm [shape: bf16[128,128], index: 3, kind: output, shape index: {}]
  %s4 = sld [smem:[#allocation0]]
  $region53: #{tpu_custom_call.1} parent=0
    _
  %s6 = ssub.s32 1, %s4
  %s7 = scalar_select 0, %s6, %s4
  $region1: #{tpu_custom_call.1} parent=0
    #allocation2 [shape = 'u8[32768]{0}', space=vmem, size = 0x8000, scoped, tag = 'input window, operand 0']
    #allocation3 [shape = 's32[2]{0}', space=sflag, size = 0x8, scoped, tag = 'scoped memory for tpu_custom_call.1']
    #allocation4 [shape = 's32[2]{0}', space=sflag, size = 0x8, scoped, tag = 'scoped memory for tpu_custom_call.1']
    #allocation5 [shape = 'u8[32768]{0}', space=vmem, size = 0x8000, scoped, tag = 'input window, operand 1, single buffered']
    #allocation6 [shape = 's32[1]{0}', space=sflag, size = 0x4, scoped, tag = 'scoped memory for tpu_custom_call.1']
    #allocation7 [shape = 'u8[32768]{0}', space=vmem, size = 0x8000, scoped, tag = 'output window, operand 0']
    %8 = vsyncpa [#allocation3], 0
    %s9 = scalar_lea.sflag [#allocation3], 1
    %10 = vsyncpa %s9, 0
    %11 = vsyncpa [#allocation6], 0
    %12 = vsyncpa [#allocation4], 0
    %s13 = scalar_lea.sflag [#allocation4], 1
    %14 = vsyncpa %s13, 0
    loop: start=0, step=1, limit=4
    $region2: #{tpu_custom_call.1} parent=1 // loop_pre_header
      _
    $region3: #{tpu_custom_call.1} parent=1 // loop_header
      %s16 = sphi 0, %s20
      %p17 = scmp.ge.s32.totalorder %s16, 4
      %s26 = sphi 0, %s28
      %s29 = sphi 0, %s26
      %s30 = sphi 0, %s29
      %s46 = sphi 0, %s30
      %s50 = sphi 0, %s50
      %s52 = sphi 0, %s50
      %s53 = sphi 0, %s52
      %s67 = sphi 0, %s53
      %s71 = sphi 0, %s71
      %s73 = sphi 0, %s71
      %s74 = sphi 0, %s73
      %s88 = sphi 0, %s74
      %s94 = sphi 0, %s96
      %s97 = sphi 0, %s94
      %s98 = sphi 0, %s97
      %s114 = sphi 0, %s98
    $region4: #{tpu_custom_call.1} parent=1 // loop_header_branch
      %19 = sbr.rel (%p17) target = $region8
    $region5: #{tpu_custom_call.1} parent=1 // loop_body
      %s21 = ssub.s32 %s16, 1
      %s22 = ssub.s32 %s16, 2
      %s23 = sadd.s32 %s16, 1
      %s24 = ssub.s32 %s16, %s23
      %p25 = scmp.eq.s32.totalorder %s24, 0
      %s27 = sadd.s32 %s26, 1
      %s28 = scalar_select %p25, %s26, %s27
      %p31 = pneg %p25
      %p32 = scmp.eq.s32.totalorder %s16, 1
      %p33 = por %p31, %p32
      %p34 = scmp.ne.s32.totalorder %s26, %s29
      %p35 = scmp.eq.s32.totalorder %s16, 0
      %p36 = por %p34, %p35
      %p37 = scmp.ne.s32.totalorder %s26, %s29
      %p38 = scmp.eq.s32.totalorder %s21, 1
      %p39 = por %p37, %p38
      %p40 = scmp.ne.s32.totalorder %s29, %s30
      %p41 = scmp.eq.s32.totalorder %s21, 0
      %p42 = por %p40, %p41
      %p43 = scmp.ne.s32.totalorder %s29, %s30
      %p44 = scmp.eq.s32.totalorder %s22, 1
      %p45 = por %p43, %p44
      %p47 = scmp.ne.s32.totalorder %s30, %s46
      %p48 = scmp.eq.s32.totalorder %s22, 0
      %p49 = por %p47, %p48
      %s51 = sadd.s32 %s50, 1
      %p54 = scmp.eq.s32.totalorder %s16, 1
      %p55 = scmp.ne.s32.totalorder %s50, %s52
      %p56 = scmp.eq.s32.totalorder %s16, 0
      %p57 = por %p55, %p56
      %p58 = scmp.ne.s32.totalorder %s50, %s52
      %p59 = scmp.eq.s32.totalorder %s21, 1
      %p60 = por %p58, %p59
      %p61 = scmp.ne.s32.totalorder %s52, %s53
      %p62 = scmp.eq.s32.totalorder %s21, 0
      %p63 = por %p61, %p62
      %p64 = scmp.ne.s32.totalorder %s52, %s53
      %p65 = scmp.eq.s32.totalorder %s22, 1
      %p66 = por %p64, %p65
      %p68 = scmp.ne.s32.totalorder %s53, %s67
      %p69 = scmp.eq.s32.totalorder %s22, 0
      %p70 = por %p68, %p69
      %s72 = sadd.s32 %s71, 1
      %p75 = scmp.eq.s32.totalorder %s16, 1
      %p76 = scmp.ne.s32.totalorder %s71, %s73
      %p77 = scmp.eq.s32.totalorder %s16, 0
      %p78 = por %p76, %p77
      %p79 = scmp.ne.s32.totalorder %s71, %s73
      %p80 = scmp.eq.s32.totalorder %s21, 1
      %p81 = por %p79, %p80
      %p82 = scmp.ne.s32.totalorder %s73, %s74
      %p83 = scmp.eq.s32.totalorder %s21, 0
      %p84 = por %p82, %p83
      %p85 = scmp.ne.s32.totalorder %s73, %s74
      %p86 = scmp.eq.s32.totalorder %s22, 1
      %p87 = por %p85, %p86
      %p89 = scmp.ne.s32.totalorder %s74, %s88
      %p90 = scmp.eq.s32.totalorder %s22, 0
      %p91 = por %p89, %p90
      %s92 = ssub.s32 %s16, %s23
      %p93 = scmp.eq.s32.totalorder %s92, 0
      %s95 = sadd.s32 %s94, 1
      %s96 = scalar_select %p93, %s94, %s95
      %p99 = pneg %p93
      %p100 = scmp.eq.s32.totalorder %s16, 1
      %p101 = por %p99, %p100
      %p102 = scmp.ne.s32.totalorder %s94, %s97
      %p103 = scmp.eq.s32.totalorder %s16, 0
      %p104 = por %p102, %p103
      %p105 = scmp.ne.s32.totalorder %s94, %s97
      %p106 = scmp.eq.s32.totalorder %s21, 1
      %p107 = por %p105, %p106
      %p108 = scmp.ne.s32.totalorder %s97, %s98
      %p109 = scmp.eq.s32.totalorder %s21, 0
      %p110 = por %p108, %p109
      %p111 = scmp.ne.s32.totalorder %s97, %s98
      %p112 = scmp.eq.s32.totalorder %s22, 1
      %p113 = por %p111, %p112
      %p115 = scmp.ne.s32.totalorder %s98, %s114
      %p116 = scmp.eq.s32.totalorder %s22, 0
      %p117 = por %p115, %p116
      %p118 = scmp.le.s32.totalorder 1, %s16
      %p119 = scmp.lt.s32.totalorder %s16, 3
      %p120 = pnand %p118, %p119
      %p121 = pneg %p120
      // Predicated region
      $region9: #{tpu_custom_call.1} parent=5 // pred_check
        _
      $region10: #{tpu_custom_call.1} parent=5 // pred_check_branch
        %123 = sbr.rel (%p120) target = $region12
      $region11: #{tpu_custom_call.1} parent=5 // pred_region
        %s124 = ssub.s32 %s16, 1
        // Predicated region
        $region13: #{tpu_custom_call.1} parent=11 // pred_check
          %p125 = pneg %p63
        $region14: #{tpu_custom_call.1} parent=11 // pred_check_branch
          %127 = sbr.rel (%p125) target = $region16
        $region15: #{tpu_custom_call.1} parent=11 // pred_region
          %s129 = ssub.s32 1024, 1024
          %130 = vsyncadd [#allocation6], %s129
          %s131 = sshll.u32 [#allocation5], 4
          %s132 = int_to_ptr.vmem [resolvable:$true] %s131
          %137 = dma.hbm_to_vmem [thread:$0]  %s1, 1024, %s132, [#allocation6], 64, 64, 4
        $region16: #{tpu_custom_call.1} parent=11 // pred_fallthru
          _
        // Predicated region
        $region17: #{tpu_custom_call.1} parent=11 // pred_check
          %p138 = pneg %p84
        $region18: #{tpu_custom_call.1} parent=11 // pred_check_branch
          %140 = sbr.rel (%p138) target = $region20
        $region19: #{tpu_custom_call.1} parent=11 // pred_region
          _
        $region20: #{tpu_custom_call.1} parent=11 // pred_fallthru
          _
      $region12: #{tpu_custom_call.1} parent=5 // pred_fallthru
        _
      %p141 = scmp.lt.s32.totalorder %s16, 2
      // Predicated region
      $region21: #{tpu_custom_call.1} parent=5 // pred_check
        %p142 = pneg %p141
      $region22: #{tpu_custom_call.1} parent=5 // pred_check_branch
        %144 = sbr.rel (%p142) target = $region24
      $region23: #{tpu_custom_call.1} parent=5 // pred_region
        // Predicated region
        $region25: #{tpu_custom_call.1} parent=23 // pred_check
          %p145 = pneg %p36
        $region26: #{tpu_custom_call.1} parent=23 // pred_check_branch
          %147 = sbr.rel (%p145) target = $region28
        $region27: #{tpu_custom_call.1} parent=23 // pred_region
          %s148 = sand.u32 %s26, 1
          %s149 = scalar_lea.sflag [#allocation3], %s148
          %s150 = sand.u32 %s26, 1
          %s151 = smul.addr %s150, 32
          %s152 = scalar_lea.vmem [#allocation2], %s151
          %s153 = smul.u32 8, %s16
          %s155 = ssub.s32 512, 512
          %156 = vsyncadd %s149, %s155
          %s157 = smul.addr %s153, 64
          %s158 = scalar_lea.hbm %s0, %s157
          %s159 = sshll.u32 %s152, 4
          %s160 = int_to_ptr.vmem [resolvable:$true] %s159
          %165 = dma.hbm_to_vmem [thread:$0]  %s158, 512, %s160, %s149, 64, 64, 4
        $region28: #{tpu_custom_call.1} parent=23 // pred_fallthru
          _
      $region24: #{tpu_custom_call.1} parent=5 // pred_fallthru
        _
      %p166 = scmp.le.s32.totalorder 1, %s16
      %p167 = scmp.lt.s32.totalorder %s16, 3
      %p168 = pnand %p166, %p167
      %p169 = pneg %p168
      // Predicated region
      $region29: #{tpu_custom_call.1} parent=5 // pred_check
        _
      $region30: #{tpu_custom_call.1} parent=5 // pred_check_branch
        %171 = sbr.rel (%p168) target = $region32
      $region31: #{tpu_custom_call.1} parent=5 // pred_region
        %s172 = ssub.s32 %s16, 1
        %s173 = sand.u32 %s29, 1
        %s174 = scalar_lea.sflag [#allocation3], %s173
        %s175 = sand.u32 %s29, 1
        %s176 = smul.addr %s175, 32
        %s177 = scalar_lea.vmem [#allocation2], %s176
        // Predicated region
        $region33: #{tpu_custom_call.1} parent=31 // pred_check
          %p178 = pneg %p42
        $region34: #{tpu_custom_call.1} parent=31 // pred_check_branch
          %180 = sbr.rel (%p178) target = $region36
        $region35: #{tpu_custom_call.1} parent=31 // pred_region
          %181 = dma.done %s174, 512
        $region36: #{tpu_custom_call.1} parent=31 // pred_fallthru
          _
        // Predicated region
        $region37: #{tpu_custom_call.1} parent=31 // pred_check
          %p182 = pneg %p63
        $region38: #{tpu_custom_call.1} parent=31 // pred_check_branch
          %184 = sbr.rel (%p182) target = $region40
        $region39: #{tpu_custom_call.1} parent=31 // pred_region
          %185 = dma.done [#allocation6], 1024
        $region40: #{tpu_custom_call.1} parent=31 // pred_fallthru
          _
        %s186 = sand.u32 %s29, 1
        %s187 = scalar_lea.sflag [#allocation3], %s186
        %s188 = sand.u32 %s29, 1
        %s189 = smul.addr %s188, 32
        %s190 = scalar_lea.vmem [#allocation2], %s189
        %p191 = pneg %p42
        %p192 = pneg %p39
        %p193 = pneg %p63
        %p194 = pneg %p60
        %p195 = pneg %p84
        %p196 = pneg %p81
        %p197 = pneg %p110
        %p198 = pneg %p107
        %s199 = sand.u32 %s97, 1
        %s200 = scalar_lea.sflag [#allocation4], %s199
        %s201 = sand.u32 %s97, 1
        %s202 = smul.addr %s201, 32
        %s203 = scalar_lea.vmem [#allocation7], %s202
        %s204 = smul.u32 8, %s21
        %s205 = smul.u32 8, %s21
        %v207 = vld [vmem:[%s177] sm:$0xf]
        %v208 = vld [vmem:[%s177 + $0x4] sm:$0xf]
        %v209 = vld [vmem:[%s177 + $0x8] sm:$0xf]
        %v210 = vld [vmem:[%s177 + $0xc] sm:$0xf]
        %v211 = vld [vmem:[%s177 + $0x10] sm:$0xf]
        %v212 = vld [vmem:[%s177 + $0x14] sm:$0xf]
        %v213 = vld [vmem:[%s177 + $0x18] sm:$0xf]
        %v214 = vld [vmem:[%s177 + $0x1c] sm:$0xf]
        %v215 = vld [vmem:[#allocation5] sm:$0xf]
        %v216 = vld [vmem:[#allocation5 + $0x4] sm:$0xf]
        %v217 = vld [vmem:[#allocation5 + $0x8] sm:$0xf]
        %v218 = vld [vmem:[#allocation5 + $0xc] sm:$0xf]
        %v219 = vld [vmem:[#allocation5 + $0x10] sm:$0xf]
        %v220 = vld [vmem:[#allocation5 + $0x14] sm:$0xf]
        %v221 = vld [vmem:[#allocation5 + $0x18] sm:$0xf]
        %v222 = vld [vmem:[#allocation5 + $0x1c] sm:$0xf]
        %v223 = vld [vmem:[#allocation5 + $0x20] sm:$0xf]
        %v224 = vld [vmem:[#allocation5 + $0x24] sm:$0xf]
        %v225 = vld [vmem:[#allocation5 + $0x28] sm:$0xf]
        %v226 = vld [vmem:[#allocation5 + $0x2c] sm:$0xf]
        %v227 = vld [vmem:[#allocation5 + $0x30] sm:$0xf]
        %v228 = vld [vmem:[#allocation5 + $0x34] sm:$0xf]
        %v229 = vld [vmem:[#allocation5 + $0x38] sm:$0xf]
        %v230 = vld [vmem:[#allocation5 + $0x3c] sm:$0xf]
        %v231 = vld [vmem:[%s2] sm:$0x1]
        %v233 = vlaneseq
        %v234 = vshrl.u32 %v233, 7
        %v235 = vsub.s32 0, %v234
        %v236 = vrot.slane %v231, %v235
        %v246 = vunpack.c.l.b16 %v207
        %v247 = vunpack.c.l.b16 %v208
        %v248 = vunpack.c.l.b16 %v209
        %v249 = vunpack.c.l.b16 %v210
        %v250 = vunpack.c.l.b16 %v211
        %v251 = vunpack.c.l.b16 %v212
        %v252 = vunpack.c.l.b16 %v213
        %v253 = vunpack.c.l.b16 %v214
        %v254 = vpack.c.b16 %v247, %v246
        %v255 = vpack.c.b16 %v249, %v248
        %v256 = vpack.c.b16 %v251, %v250
        %v257 = vpack.c.b16 %v253, %v252
        %v278 = vunpack.c.l.b16 %v215
        %v279 = vunpack.c.l.b16 %v216
        %v280 = vunpack.c.l.b16 %v217
        %v281 = vunpack.c.l.b16 %v218
        %v282 = vunpack.c.l.b16 %v219
        %v283 = vunpack.c.l.b16 %v220
        %v284 = vunpack.c.l.b16 %v221
        %v285 = vunpack.c.l.b16 %v222
        %v286 = vunpack.c.l.b16 %v223
        %v287 = vunpack.c.l.b16 %v224
        %v288 = vunpack.c.l.b16 %v225
        %v289 = vunpack.c.l.b16 %v226
        %v290 = vunpack.c.l.b16 %v227
        %v291 = vunpack.c.l.b16 %v228
        %v292 = vunpack.c.l.b16 %v229
        %v293 = vunpack.c.l.b16 %v230
        %v294 = vpack.c.b16 %v279, %v278
        %v295 = vpack.c.b16 %v281, %v280
        %v296 = vpack.c.b16 %v283, %v282
        %v297 = vpack.c.b16 %v285, %v284
        %v298 = vpack.c.b16 %v287, %v286
        %v299 = vpack.c.b16 %v289, %v288
        %v300 = vpack.c.b16 %v291, %v290
        %v301 = vpack.c.b16 %v293, %v292
        %310 = vmatprep.subr.bf16.mxu0 0
        %311 = vmatpush1.bf16.msra.mxu0 %v301
        %312 = vmatprep.subr.bf16.mxu0 0
        %313 = vmatpush1.bf16.msra.mxu0 %v300
        %314 = vmatprep.subr.bf16.mxu0 0
        %315 = vmatpush1.bf16.msra.mxu0 %v299
        %316 = vmatprep.subr.bf16.mxu0 0
        %317 = vmatpush1.bf16.msra.mxu0 %v298
        %318 = vmatprep.subr.bf16.mxu0 0
        %319 = vmatpush1.bf16.msra.mxu0 %v297
        %320 = vmatprep.subr.bf16.mxu0 0
        %321 = vmatpush1.bf16.msra.mxu0 %v296
        %322 = vmatprep.subr.bf16.mxu0 0
        %323 = vmatpush1.bf16.msra.mxu0 %v295
        %324 = vmatprep.subr.bf16.mxu0 0
        %325 = vmatpush1.bf16.msra.mxu0 %v294
        %326 = vmatprep.subr.bf16.mxu0 0
        %327 = vmatpush2.bf16.msra.mxu0 0
        %328 = vmatprep.subr.bf16.mxu0 0
        %329 = vmatpush2.bf16.msra.mxu0 0
        %330 = vmatprep.subr.bf16.mxu0 0
        %331 = vmatpush2.bf16.msra.mxu0 0
        %332 = vmatprep.subr.bf16.mxu0 0
        %333 = vmatpush2.bf16.msra.mxu0 0
        %334 = vmatprep.subr.bf16.mxu0 0
        %335 = vmatpush2.bf16.msra.mxu0 0
        %336 = vmatprep.subr.bf16.mxu0 0
        %337 = vmatpush2.bf16.msra.mxu0 0
        %338 = vmatprep.subr.bf16.mxu0 0
        %339 = vmatpush2.bf16.msra.mxu0 0
        %340 = vmatprep.subr.bf16.mxu0 0
        %341 = vmatpush2.bf16.msra.mxu0 0
        %342 = vmatprep.mubr.bf16.mxu0 0
        %343 = vmatmul.mubr.bf16.gmra.mxu0 %v254
        %v344 = vpop.f32.mrf.mxu0
        %v345 = vadd.f32 %v236, %v344
        %v346 = vpop.f32.mrf.mxu0
        %v347 = vpop.f32.mrf.mxu0
        %v348 = vadd.f32 %v236, %v347
        %v349 = vpop.f32.mrf.mxu0
        %350 = vmatprep.mubr.bf16.mxu0 0
        %351 = vmatmul.mubr.bf16.gmra.mxu0 %v255
        %v352 = vpop.f32.mrf.mxu0
        %v353 = vadd.f32 %v236, %v352
        %v354 = vpop.f32.mrf.mxu0
        %v355 = vpop.f32.mrf.mxu0
        %v356 = vadd.f32 %v236, %v355
        %v357 = vpop.f32.mrf.mxu0
        %358 = vmatprep.mubr.bf16.mxu0 0
        %359 = vmatmul.mubr.bf16.gmra.mxu0 %v256
        %v360 = vpop.f32.mrf.mxu0
        %v361 = vadd.f32 %v236, %v360
        %v362 = vpop.f32.mrf.mxu0
        %v363 = vpop.f32.mrf.mxu0
        %v364 = vadd.f32 %v236, %v363
        %v365 = vpop.f32.mrf.mxu0
        %366 = vmatprep.mubr.bf16.mxu0 0
        %367 = vmatmul.mubr.bf16.gmra.mxu0 %v257
        %v368 = vpop.f32.mrf.mxu0
        %v369 = vadd.f32 %v236, %v368
        %v370 = vpop.f32.mrf.mxu0
        %v371 = vpop.f32.mrf.mxu0
        %v372 = vadd.f32 %v236, %v371
        %v373 = vpop.f32.mrf.mxu0
        %374 = vdwg.mxu0
        %v375 = vmax.f32 %v345, 0.0
        %v376 = vmax.f32 %v348, 0.0
        %v377 = vmax.f32 %v353, 0.0
        %v378 = vmax.f32 %v356, 0.0
        %v379 = vmax.f32 %v361, 0.0
        %v380 = vmax.f32 %v364, 0.0
        %v381 = vmax.f32 %v369, 0.0
        %v382 = vmax.f32 %v372, 0.0
        %v383 = vpack.c.bf16 %v376, %v375
        %v384 = vpack.c.bf16 %v378, %v377
        %v385 = vpack.c.bf16 %v380, %v379
        %v386 = vpack.c.bf16 %v382, %v381
        %v391 = vunpack.c.l.b16 %v383
        %v392 = vunpack.c.h.b16 %v383
        %v393 = vunpack.c.l.b16 %v384
        %v394 = vunpack.c.h.b16 %v384
        %v395 = vunpack.c.l.b16 %v385
        %v396 = vunpack.c.h.b16 %v385
        %v397 = vunpack.c.l.b16 %v386
        %v398 = vunpack.c.h.b16 %v386
        %v399 = vpack.c.b16 %v391, %v391
        %v400 = vpack.c.b16 %v392, %v392
        %v401 = vpack.c.b16 %v393, %v393
        %v402 = vpack.c.b16 %v394, %v394
        %v403 = vpack.c.b16 %v395, %v395
        %v404 = vpack.c.b16 %v396, %v396
        %v405 = vpack.c.b16 %v397, %v397
        %v406 = vpack.c.b16 %v398, %v398
        %415 = vst [vmem:[%s203] sm:$0xf] %v399
        %416 = vst [vmem:[%s203 + $0x4] sm:$0xf] %v400
        %417 = vst [vmem:[%s203 + $0x8] sm:$0xf] %v401
        %418 = vst [vmem:[%s203 + $0xc] sm:$0xf] %v402
        %419 = vst [vmem:[%s203 + $0x10] sm:$0xf] %v403
        %420 = vst [vmem:[%s203 + $0x14] sm:$0xf] %v404
        %421 = vst [vmem:[%s203 + $0x18] sm:$0xf] %v405
        %422 = vst [vmem:[%s203 + $0x1c] sm:$0xf] %v406
        %s423 = sand.u32 %s97, 1
        %s424 = scalar_lea.sflag [#allocation4], %s423
        %s425 = sand.u32 %s97, 1
        %s426 = smul.addr %s425, 32
        %s427 = scalar_lea.vmem [#allocation7], %s426
        // Predicated region
        $region41: #{tpu_custom_call.1} parent=31 // pred_check
          %p428 = pneg %p107
        $region42: #{tpu_custom_call.1} parent=31 // pred_check_branch
          %430 = sbr.rel (%p428) target = $region44
        $region43: #{tpu_custom_call.1} parent=31 // pred_region
          %s431 = smul.u32 8, %s21
          %s433 = ssub.s32 512, 512
          %434 = vsyncadd %s424, %s433
          %s435 = smul.addr %s431, 64
          %s436 = scalar_lea.hbm %s3, %s435
          %s437 = sshll.u32 %s427, 4
          %s438 = int_to_ptr.vmem [resolvable:$true] %s437
          %443 = dma.vmem_to_hbm [thread:$0]  %s438, 512, %s436, %s424, 64, 64, 4
        $region44: #{tpu_custom_call.1} parent=31 // pred_fallthru
          _
      $region32: #{tpu_custom_call.1} parent=5 // pred_fallthru
        _
      %p444 = scmp.le.s32.totalorder 2, %s16
      // Predicated region
      $region45: #{tpu_custom_call.1} parent=5 // pred_check
        %p445 = pneg %p444
      $region46: #{tpu_custom_call.1} parent=5 // pred_check_branch
        %447 = sbr.rel (%p445) target = $region48
      $region47: #{tpu_custom_call.1} parent=5 // pred_region
        %s448 = ssub.s32 %s16, 2
        // Predicated region
        $region49: #{tpu_custom_call.1} parent=47 // pred_check
          %p449 = pneg %p113
        $region50: #{tpu_custom_call.1} parent=47 // pred_check_branch
          %451 = sbr.rel (%p449) target = $region52
        $region51: #{tpu_custom_call.1} parent=47 // pred_region
          %s452 = sand.u32 %s98, 1
          %s453 = scalar_lea.sflag [#allocation4], %s452
          %s454 = sand.u32 %s98, 1
          %s455 = smul.addr %s454, 32
          %s456 = scalar_lea.vmem [#allocation7], %s455
          %457 = dma.done %s453, 512
        $region52: #{tpu_custom_call.1} parent=47 // pred_fallthru
          _
      $region48: #{tpu_custom_call.1} parent=5 // pred_fallthru
        _
    $region6: #{tpu_custom_call.1} parent=1 // loop_footer
      %s20 = sadd.s32 1, %s16
    $region7: #{tpu_custom_call.1} parent=1 // loop_footer_branch
      %15 = sbr.rel target = $region3
    $region8: #{tpu_custom_call.1} parent=1 // loop_exit
      _
    %458 = vsyncpa [#allocation3], 1
    %s459 = scalar_lea.sflag [#allocation3], 1
    %460 = vsyncpa %s459, 1
    %461 = vsyncpa [#allocation6], 1
    %462 = vsyncpa [#allocation4], 1
    %s463 = scalar_lea.sflag [#allocation4], 1
    %464 = vsyncpa %s463, 1

</llo_original>
